<compile_context>
chip_gen: v7x
topology: tpu7x:2x2x1
jax: 0.10.0
libtpu: 0.0.40
codegen_flags: <defaults>
</compile_context>

<pallas_src>
import functools

import jax
import jax.numpy as jnp
from jax.experimental import pallas as pl
from jax.experimental.pallas import tpu as pltpu


def _bce_dice_kernel(yp_ref, yt_ref, out_ref, acc_bce, acc_inter, acc_den, *,
                     smoothing):
    j = pl.program_id(1)
    nj = pl.num_programs(1)

    @pl.when(j == 0)
    def _():
        acc_bce[...] = jnp.zeros_like(acc_bce)
        acc_inter[...] = jnp.zeros_like(acc_inter)
        acc_den[...] = jnp.zeros_like(acc_den)

    yp = yp_ref[...].astype(jnp.float32)          # (C, TL) logits
    yt = yt_ref[...].astype(jnp.float32)          # (C, TL) targets
    # label smoothing:  t = t * (1 - s) + 0.5 * s
    yt = yt * (1.0 - smoothing) + 0.5 * smoothing

    # numerically stable BCE-with-logits (same form PyTorch uses):
    #   max(x, 0) - x * t + log1p(exp(-|x|))
    bce = (jnp.maximum(yp, 0.0) - yp * yt
           + jnp.log1p(jnp.exp(-jnp.abs(yp))))
    acc_bce[...] += bce                           # pure VPU, no reductions here

    # dice term uses channel 0 only (raw logits + smoothed targets)
    yp0 = yp[0:1, :]
    yt0 = yt[0:1, :]
    acc_inter[...] += yp0 * yt0
    acc_den[...] += yp0 + yt0

    @pl.when(j == nj - 1)
    def _():
        bce_total = jnp.sum(acc_bce[...])
        inter = jnp.sum(acc_inter[...])
        den = jnp.sum(acc_den[...])
        rows = jax.lax.broadcasted_iota(jnp.int32, (8, 128), 0)
        vals = jnp.where(rows == 0, bce_total,
               jnp.where(rows == 1, inter,
               jnp.where(rows == 2, den, 0.0)))
        out_ref[...] = vals                       # full unmasked (8,128) store


def _pick_col_tile(C, L, target_bytes=1 << 20):
    """Largest divisor of L that is a multiple of 128 with a (C, TL) f32 tile
    under ~target_bytes.  Falls back to the full row (full-dim block is always
    legal) when L is small or not a multiple of 128."""
    best = None
    t = 128
    while t <= L:
        if L % t == 0 and C * t * 4 <= target_bytes:
            best = t
        t += 128
    if best is None:
        best = L
    return best


def bce_dice_loss(y_pred, y_true, *, bce_weight=0.5, smooth_nr=1e-05,
                  smooth_dr=1e-05, smoothing=0.05):
    """Pallas TPU implementation of fault_detection.metrics.bce_dice_loss.forward."""
    assert y_pred.shape == y_true.shape
    N, C, H, W = y_pred.shape
    L = H * W

    # Lane-dense layout: (N, C, H*W) -- channel 0 is row 0 of every tile.
    yp2 = y_pred.reshape(N, C, L)
    yt2 = y_true.reshape(N, C, L)

    TL = _pick_col_tile(C, L)
    n_col = L // TL

    kernel = functools.partial(_bce_dice_kernel, smoothing=float(smoothing))

    partials = pl.pallas_call(
        kernel,
        out_shape=jax.ShapeDtypeStruct((N, 8, 128), jnp.float32),
        grid_spec=pltpu.PrefetchScalarGridSpec(
            num_scalar_prefetch=0,
            grid=(N, n_col),
            in_specs=[
                pl.BlockSpec((pl.Squeezed(), C, TL), lambda i, j: (i, 0, j)),
                pl.BlockSpec((pl.Squeezed(), C, TL), lambda i, j: (i, 0, j)),
            ],
            out_specs=pl.BlockSpec((pl.Squeezed(), 8, 128),
                                   lambda i, j: (i, 0, 0)),
            scratch_shapes=[
                pltpu.VMEM((C, TL), jnp.float32),   # elementwise BCE accumulator
                pltpu.VMEM((1, TL), jnp.float32),   # channel-0 intersection
                pltpu.VMEM((1, TL), jnp.float32),   # channel-0 denominator
            ],
        ),
        compiler_params=pltpu.CompilerParams(
            dimension_semantics=("parallel", "arbitrary"),
            vmem_limit_bytes=32 * 1024 * 1024,
        ),
    )(yp2, yt2)

    bce_sum = partials[:, 0, 0]
    inter = partials[:, 1, 0]
    den = partials[:, 2, 0]

    # Final (tiny) combine in plain JAX so the batch axis stays parallel.
    bce_mean = jnp.sum(bce_sum) / float(N * C * H * W)        # reduction='mean'
    dice = jnp.mean((2.0 * inter + smooth_nr) / (den + smooth_dr))
    return bce_mean * bce_weight + (1.0 - dice) * (1.0 - bce_weight)


def _reference_bce_dice_loss(y_pred, y_true, *, bce_weight=0.5,
                             smooth_nr=1e-05, smooth_dr=1e-05, smoothing=0.05):
    """Plain-JAX reference mirroring the PyTorch module."""
    yp = y_pred.astype(jnp.float32)
    yt = y_true.astype(jnp.float32) * (1.0 - smoothing) + 0.5 * smoothing
    bce = jnp.maximum(yp, 0.0) - yp * yt + jnp.log1p(jnp.exp(-jnp.abs(yp)))
    bce_mean = jnp.mean(bce)
    yp0 = yp[:, 0].reshape(yp.shape[0], -1)
    yt0 = yt[:, 0].reshape(yt.shape[0], -1)
    inter = jnp.sum(yp0 * yt0, axis=1)
    denom = jnp.sum(yt0, axis=1) + jnp.sum(yp0, axis=1)
    dice = jnp.mean((2.0 * inter + smooth_nr) / (denom + smooth_dr))
    return bce_mean * bce_weight + (1.0 - dice) * (1.0 - bce_weight)


if __name__ == "__main__":
    key = jax.random.PRNGKey(0)
    k1, k2 = jax.random.split(key)
    N, C, H, W = 2, 4, 16, 16
    y_pred = jax.random.normal(k1, (N, C, H, W), dtype=jnp.float32)        # logits
    y_true = (jax.random.uniform(k2, (N, C, H, W)) > 0.5).astype(jnp.float32)

    loss = bce_dice_loss(y_pred, y_true)
    jax.block_until_ready(loss)

    ref = _reference_bce_dice_loss(y_pred, y_true)
    assert jnp.allclose(loss, ref, rtol=1e-3, atol=1e-4), (loss, ref)

    print("KERNEL_OK")
</pallas_src>

<mosaic_0001>
module attributes {stable_mosaic.version = 11 : i64} {
  func.func @_bce_dice_kernel(%arg0: i32, %arg1: i32, %arg2: memref<1x4x256xf32, #tpu.memory_space<vmem>>, %arg3: memref<1x4x256xf32, #tpu.memory_space<vmem>>, %arg4: memref<1x8x128xf32, #tpu.memory_space<vmem>>, %arg5: memref<4x256xf32, #tpu.memory_space<vmem>>, %arg6: memref<1x256xf32, #tpu.memory_space<vmem>>, %arg7: memref<1x256xf32, #tpu.memory_space<vmem>>) attributes {dimension_semantics = [#tpu.dimension_semantics<parallel>, #tpu.dimension_semantics<arbitrary>], iteration_bounds = array<i64: 2, 1>, scalar_prefetch = 0 : i64, scratch_operands = 3 : i64, tpu.core_type = #tpu.core_type<tc>, window_params = [{transform_indices = @transform_0, window_bounds = array<i64: 1, 4, 256>}, {transform_indices = @transform_1, window_bounds = array<i64: 1, 4, 256>}, {transform_indices = @transform_2, window_bounds = array<i64: 1, 8, 128>}]} {
    %c0_i32 = arith.constant 0 : i32
    %0 = arith.cmpi eq, %arg1, %c0_i32 : i32
    %1 = arith.extui %0 : i1 to i32
    %c0_i32_0 = arith.constant 0 : i32
    %2 = arith.cmpi ne, %1, %c0_i32_0 : i32
    scf.if %2 {
      %cst_23 = arith.constant 0.000000e+00 : f32
      %37 = vector.broadcast %cst_23 : f32 to vector<4x256xf32>
      %c0_24 = arith.constant 0 : index
      %c0_25 = arith.constant 0 : index
      %38 = vector.load %arg5[%c0_24, %c0_25] : memref<4x256xf32, #tpu.memory_space<vmem>>, vector<4x256xf32>
      tpu.vector_store %arg5[%c0_24, %c0_25], %37 {strides = array<i32>} : memref<4x256xf32, #tpu.memory_space<vmem>>, vector<4x256xf32>,
      %cst_26 = arith.constant 0.000000e+00 : f32
      %39 = vector.broadcast %cst_26 : f32 to vector<1x256xf32>
      %c0_27 = arith.constant 0 : index
      %c0_28 = arith.constant 0 : index
      %40 = vector.load %arg6[%c0_27, %c0_28] : memref<1x256xf32, #tpu.memory_space<vmem>>, vector<1x256xf32>
      tpu.vector_store %arg6[%c0_27, %c0_28], %39 {strides = array<i32>} : memref<1x256xf32, #tpu.memory_space<vmem>>, vector<1x256xf32>,
      %cst_29 = arith.constant 0.000000e+00 : f32
      %41 = vector.broadcast %cst_29 : f32 to vector<1x256xf32>
      %c0_30 = arith.constant 0 : index
      %c0_31 = arith.constant 0 : index
      %42 = vector.load %arg7[%c0_30, %c0_31] : memref<1x256xf32, #tpu.memory_space<vmem>>, vector<1x256xf32>
      tpu.vector_store %arg7[%c0_30, %c0_31], %41 {strides = array<i32>} : memref<1x256xf32, #tpu.memory_space<vmem>>, vector<1x256xf32>,
    } else {
    }
    %c0 = arith.constant 0 : index
    %c0_1 = arith.constant 0 : index
    %c0_2 = arith.constant 0 : index
    %3 = vector.load %arg2[%c0, %c0_1, %c0_2] : memref<1x4x256xf32, #tpu.memory_space<vmem>>, vector<1x4x256xf32>
    %4 = vector.shape_cast %3 : vector<1x4x256xf32> to vector<4x256xf32>
    %c0_3 = arith.constant 0 : index
    %c0_4 = arith.constant 0 : index
    %c0_5 = arith.constant 0 : index
    %5 = vector.load %arg3[%c0_3, %c0_4, %c0_5] : memref<1x4x256xf32, #tpu.memory_space<vmem>>, vector<1x4x256xf32>
    %6 = vector.shape_cast %5 : vector<1x4x256xf32> to vector<4x256xf32>
    %cst = arith.constant 0.949999988 : f32
    %7 = vector.broadcast %cst : f32 to vector<4x256xf32>
    %8 = arith.mulf %6, %7 : vector<4x256xf32>
    %cst_6 = arith.constant 2.500000e-02 : f32
    %9 = vector.broadcast %cst_6 : f32 to vector<4x256xf32>
    %10 = arith.addf %8, %9 : vector<4x256xf32>
    %cst_7 = arith.constant 0.000000e+00 : f32
    %11 = vector.broadcast %cst_7 : f32 to vector<4x256xf32>
    %12 = arith.maximumf %4, %11 : vector<4x256xf32>
    %13 = arith.mulf %4, %10 : vector<4x256xf32>
    %14 = arith.subf %12, %13 : vector<4x256xf32>
    %15 = math.absf %4 : vector<4x256xf32>
    %cst_8 = arith.constant 0.000000e+00 : f32
    %16 = vector.broadcast %cst_8 : f32 to vector<4x256xf32>
    %17 = arith.subf %16, %15 : vector<4x256xf32>
    %18 = math.exp %17 : vector<4x256xf32>
    %19 = math.log1p %18 : vector<4x256xf32>
    %20 = arith.addf %14, %19 : vector<4x256xf32>
    %c0_9 = arith.constant 0 : index
    %c0_10 = arith.constant 0 : index
    %21 = vector.load %arg5[%c0_9, %c0_10] : memref<4x256xf32, #tpu.memory_space<vmem>>, vector<4x256xf32>
    %22 = arith.addf %21, %20 : vector<4x256xf32>
    %c0_11 = arith.constant 0 : index
    %c0_12 = arith.constant 0 : index
    %23 = vector.load %arg5[%c0_11, %c0_12] : memref<4x256xf32, #tpu.memory_space<vmem>>, vector<4x256xf32>
    tpu.vector_store %arg5[%c0_11, %c0_12], %22 {strides = array<i32>} : memref<4x256xf32, #tpu.memory_space<vmem>>, vector<4x256xf32>,
    %24 = vector.extract_strided_slice %4 {offsets = [0, 0], sizes = [1, 256], strides = [1, 1]} : vector<4x256xf32> to vector<1x256xf32>
    %25 = vector.extract_strided_slice %10 {offsets = [0, 0], sizes = [1, 256], strides = [1, 1]} : vector<4x256xf32> to vector<1x256xf32>
    %c0_13 = arith.constant 0 : index
    %c0_14 = arith.constant 0 : index
    %26 = vector.load %arg6[%c0_13, %c0_14] : memref<1x256xf32, #tpu.memory_space<vmem>>, vector<1x256xf32>
    %27 = arith.mulf %24, %25 : vector<1x256xf32>
    %28 = arith.addf %26, %27 : vector<1x256xf32>
    %c0_15 = arith.constant 0 : index
    %c0_16 = arith.constant 0 : index
    %29 = vector.load %arg6[%c0_15, %c0_16] : memref<1x256xf32, #tpu.memory_space<vmem>>, vector<1x256xf32>
    tpu.vector_store %arg6[%c0_15, %c0_16], %28 {strides = array<i32>} : memref<1x256xf32, #tpu.memory_space<vmem>>, vector<1x256xf32>,
    %c0_17 = arith.constant 0 : index
    %c0_18 = arith.constant 0 : index
    %30 = vector.load %arg7[%c0_17, %c0_18] : memref<1x256xf32, #tpu.memory_space<vmem>>, vector<1x256xf32>
    %31 = arith.addf %24, %25 : vector<1x256xf32>
    %32 = arith.addf %30, %31 : vector<1x256xf32>
    %c0_19 = arith.constant 0 : index
    %c0_20 = arith.constant 0 : index
    %33 = vector.load %arg7[%c0_19, %c0_20] : memref<1x256xf32, #tpu.memory_space<vmem>>, vector<1x256xf32>
    tpu.vector_store %arg7[%c0_19, %c0_20], %32 {strides = array<i32>} : memref<1x256xf32, #tpu.memory_space<vmem>>, vector<1x256xf32>,
    %c0_i32_21 = arith.constant 0 : i32
    %34 = arith.cmpi eq, %arg1, %c0_i32_21 : i32
    %35 = arith.extui %34 : i1 to i32
    %c0_i32_22 = arith.constant 0 : i32
    %36 = arith.cmpi ne, %35, %c0_i32_22 : i32
    scf.if %36 {
      %c0_23 = arith.constant 0 : index
      %c0_24 = arith.constant 0 : index
      %37 = vector.load %arg5[%c0_23, %c0_24] : memref<4x256xf32, #tpu.memory_space<vmem>>, vector<4x256xf32>
      %38 = vector.shape_cast %37 : vector<4x256xf32> to vector<1x4x256xf32>
      %cst_25 = arith.constant dense<0.000000e+00> : vector<1xf32>
      %39 = vector.multi_reduction <add>, %38, %cst_25 [1, 2] : vector<1x4x256xf32> to vector<1xf32>
      %40 = vector.shape_cast %39 : vector<1xf32> to vector<1x1x1xf32>
      %41 = vector.extract %40[0, 0, 0] : f32 from vector<1x1x1xf32>
      %c0_26 = arith.constant 0 : index
      %c0_27 = arith.constant 0 : index
      %42 = vector.load %arg6[%c0_26, %c0_27] : memref<1x256xf32, #tpu.memory_space<vmem>>, vector<1x256xf32>
      %43 = vector.shape_cast %42 : vector<1x256xf32> to vector<1x1x256xf32>
      %cst_28 = arith.constant dense<0.000000e+00> : vector<1xf32>
      %44 = vector.multi_reduction <add>, %43, %cst_28 [1, 2] : vector<1x1x256xf32> to vector<1xf32>
      %45 = vector.shape_cast %44 : vector<1xf32> to vector<1x1x1xf32>
      %46 = vector.extract %45[0, 0, 0] : f32 from vector<1x1x1xf32>
      %c0_29 = arith.constant 0 : index
      %c0_30 = arith.constant 0 : index
      %47 = vector.load %arg7[%c0_29, %c0_30] : memref<1x256xf32, #tpu.memory_space<vmem>>, vector<1x256xf32>
      %48 = vector.shape_cast %47 : vector<1x256xf32> to vector<1x1x256xf32>
      %cst_31 = arith.constant dense<0.000000e+00> : vector<1xf32>
      %49 = vector.multi_reduction <add>, %48, %cst_31 [1, 2] : vector<1x1x256xf32> to vector<1xf32>
      %50 = vector.shape_cast %49 : vector<1xf32> to vector<1x1x1xf32>
      %51 = vector.extract %50[0, 0, 0] : f32 from vector<1x1x1xf32>
      %52 = tpu.iota {dimensions = array<i32: 0>} : vector<8x128xi32>
      %c0_i32_32 = arith.constant 0 : i32
      %53 = vector.broadcast %c0_i32_32 : i32 to vector<8x128xi32>
      %54 = arith.cmpi eq, %52, %53 : vector<8x128xi32>
      %c1_i32 = arith.constant 1 : i32
      %55 = vector.broadcast %c1_i32 : i32 to vector<8x128xi32>
      %56 = arith.cmpi eq, %52, %55 : vector<8x128xi32>
      %c2_i32 = arith.constant 2 : i32
      %57 = vector.broadcast %c2_i32 : i32 to vector<8x128xi32>
      %58 = arith.cmpi eq, %52, %57 : vector<8x128xi32>
      %cst_33 = arith.constant 0.000000e+00 : f32
      %59 = vector.broadcast %51 : f32 to vector<8x128xf32>
      %60 = vector.broadcast %cst_33 : f32 to vector<8x128xf32>
      %61 = arith.select %58, %59, %60 : vector<8x128xi1>, vector<8x128xf32>
      %62 = vector.broadcast %46 : f32 to vector<8x128xf32>
      %63 = arith.select %56, %62, %61 : vector<8x128xi1>, vector<8x128xf32>
      %64 = vector.broadcast %41 : f32 to vector<8x128xf32>
      %65 = arith.select %54, %64, %63 : vector<8x128xi1>, vector<8x128xf32>
      %c0_34 = arith.constant 0 : index
      %c0_35 = arith.constant 0 : index
      %c0_36 = arith.constant 0 : index
      %66 = vector.load %arg4[%c0_34, %c0_35, %c0_36] : memref<1x8x128xf32, #tpu.memory_space<vmem>>, vector<1x8x128xf32>
      %67 = vector.shape_cast %66 : vector<1x8x128xf32> to vector<8x128xf32>
      %68 = vector.shape_cast %65 : vector<8x128xf32> to vector<1x8x128xf32>
      tpu.vector_store %arg4[%c0_34, %c0_35, %c0_36], %68 {strides = array<i32>} : memref<1x8x128xf32, #tpu.memory_space<vmem>>, vector<1x8x128xf32>,
    } else {
    }
    return
  }
  func.func @transform_0(%arg0: i32, %arg1: i32) -> (i32, i32, i32) {
    %c0_i32 = arith.constant 0 : i32
    %c0_i32_0 = arith.constant 0 : i32
    return %arg0, %c0_i32, %arg1 : i32, i32, i32
  }
  func.func @transform_1(%arg0: i32, %arg1: i32) -> (i32, i32, i32) {
    %c0_i32 = arith.constant 0 : i32
    %c0_i32_0 = arith.constant 0 : i32
    return %arg0, %c0_i32, %arg1 : i32, i32, i32
  }
  func.func @transform_2(%arg0: i32, %arg1: i32) -> (i32, i32, i32) {
    %c0_i32 = arith.constant 0 : i32
    %c0_i32_0 = arith.constant 0 : i32
    %c0_i32_1 = arith.constant 0 : i32
    return %arg0, %c0_i32, %c0_i32_0 : i32, i32, i32
  }
}

</mosaic_0001>

<llo_original>
// kernel: tpu_custom_call.1
$region0: #{tpu_custom_call.1}
  #allocation0 [shape = 'u32[]', space=smem, size = 0x4, offset = 0x4, fixed_abs, tag = 'smem constant byte address 0x4 - core index']
  #allocation1 [shape = 'u32[144,128]{1,0:T(1,128)}', space=vmem, size = 0x12000, scoped, tag = 'internal scratch']
  #allocation2 [shape = 'f32[4,256]{1,0:T(4,128)}', space=vmem, size = 0x1000, scoped, tag = 'scratch operand']
  #allocation3 [shape = 'f32[1,256]{1,0:T(1,128)}', space=vmem, size = 0x400, scoped, tag = 'scratch operand']
  #allocation4 [shape = 'f32[1,256]{1,0:T(1,128)}', space=vmem, size = 0x400, scoped, tag = 'scratch operand']
  %s0 = inlined_call_operand.hbm [shape: f32[2,4,256], index: 0, kind: input, shape index: {}]
  %s1 = inlined_call_operand.hbm [shape: f32[2,4,256], index: 1, kind: input, shape index: {}]
  %s2 = inlined_call_operand.hbm [shape: f32[2,8,128], index: 2, kind: output, shape index: {}]
  %s3 = sld [smem:[#allocation0]]
  $region57: #{tpu_custom_call.1} parent=0
    _
  %s5 = ssub.s32 1, %s3
  %s6 = scalar_select 0, %s5, %s3
  $region1: #{tpu_custom_call.1} parent=0
    #allocation5 [shape = 'u8[8192]{0}', space=vmem, size = 0x2000, scoped, tag = 'input window, operand 0']
    #allocation6 [shape = 's32[2]{0}', space=sflag, size = 0x8, scoped, tag = 'scoped memory for tpu_custom_call.1']
    #allocation7 [shape = 's32[2]{0}', space=sflag, size = 0x8, scoped, tag = 'scoped memory for tpu_custom_call.1']
    #allocation8 [shape = 'u8[8192]{0}', space=vmem, size = 0x2000, scoped, tag = 'input window, operand 1']
    #allocation9 [shape = 's32[2]{0}', space=sflag, size = 0x8, scoped, tag = 'scoped memory for tpu_custom_call.1']
    #allocation10 [shape = 'u8[8192]{0}', space=vmem, size = 0x2000, scoped, tag = 'output window, operand 0']
    %7 = vsyncpa [#allocation6], 0
    %s8 = scalar_lea.sflag [#allocation6], 1
    %9 = vsyncpa %s8, 0
    %10 = vsyncpa [#allocation9], 0
    %s11 = scalar_lea.sflag [#allocation9], 1
    %12 = vsyncpa %s11, 0
    %13 = vsyncpa [#allocation7], 0
    %s14 = scalar_lea.sflag [#allocation7], 1
    %15 = vsyncpa %s14, 0
    loop: start=0, step=1, limit=4
    $region2: #{tpu_custom_call.1} parent=1 // loop_pre_header
      _
    $region3: #{tpu_custom_call.1} parent=1 // loop_header
      %s17 = sphi 0, %s21
      %p18 = scmp.ge.s32.totalorder %s17, 4
      %s24 = sphi 0, %s36
      %s25 = sphi 0, %s32
      %s26 = sphi 0, %s24
      %s27 = sphi 0, %s25
      %s28 = sphi 0, %s26
      %s29 = sphi 0, %s27
      %s41 = sphi 0, %s43
      %s44 = sphi 0, %s41
      %s45 = sphi 0, %s44
      %s61 = sphi 0, %s45
      %s69 = sphi 0, %s71
      %s72 = sphi 0, %s69
      %s73 = sphi 0, %s72
      %s89 = sphi 0, %s73
      %s95 = sphi 0, %s97
      %s98 = sphi 0, %s95
      %s99 = sphi 0, %s98
      %s115 = sphi 0, %s99
    $region4: #{tpu_custom_call.1} parent=1 // loop_header_branch
      %20 = sbr.rel (%p18) target = $region8
    $region5: #{tpu_custom_call.1} parent=1 // loop_body
      %s22 = ssub.s32 %s17, 1
      %s23 = ssub.s32 %s17, 2
      %s30 = sadd.s32 1, %s25
      %p31 = scmp.ge.s32.totalorder %s30, 1
      %s32 = scalar_select %p31, 0, %s30
      %s33 = sadd.s32 1, %s24
      %s34 = scalar_select %p31, %s33, %s24
      %p35 = scmp.ge.s32.totalorder %s34, 2
      %s36 = scalar_select %p35, 0, %s34
      %s37 = ssub.s32 %s24, %s36
      %s38 = ssub.s32 %s25, %s32
      %s39 = sor.u32 %s37, %s38
      %p40 = scmp.eq.s32.totalorder %s39, 0
      %s42 = sadd.s32 %s41, 1
      %s43 = scalar_select %p40, %s41, %s42
      %p46 = pneg %p40
      %p47 = scmp.eq.s32.totalorder %s17, 1
      %p48 = por %p46, %p47
      %p49 = scmp.ne.s32.totalorder %s41, %s44
      %p50 = scmp.eq.s32.totalorder %s17, 0
      %p51 = por %p49, %p50
      %p52 = scmp.ne.s32.totalorder %s41, %s44
      %p53 = scmp.eq.s32.totalorder %s22, 1
      %p54 = por %p52, %p53
      %p55 = scmp.ne.s32.totalorder %s44, %s45
      %p56 = scmp.eq.s32.totalorder %s22, 0
      %p57 = por %p55, %p56
      %p58 = scmp.ne.s32.totalorder %s44, %s45
      %p59 = scmp.eq.s32.totalorder %s23, 1
      %p60 = por %p58, %p59
      %p62 = scmp.ne.s32.totalorder %s45, %s61
      %p63 = scmp.eq.s32.totalorder %s23, 0
      %p64 = por %p62, %p63
      %s65 = ssub.s32 %s24, %s36
      %s66 = ssub.s32 %s25, %s32
      %s67 = sor.u32 %s65, %s66
      %p68 = scmp.eq.s32.totalorder %s67, 0
      %s70 = sadd.s32 %s69, 1
      %s71 = scalar_select %p68, %s69, %s70
      %p74 = pneg %p68
      %p75 = scmp.eq.s32.totalorder %s17, 1
      %p76 = por %p74, %p75
      %p77 = scmp.ne.s32.totalorder %s69, %s72
      %p78 = scmp.eq.s32.totalorder %s17, 0
      %p79 = por %p77, %p78
      %p80 = scmp.ne.s32.totalorder %s69, %s72
      %p81 = scmp.eq.s32.totalorder %s22, 1
      %p82 = por %p80, %p81
      %p83 = scmp.ne.s32.totalorder %s72, %s73
      %p84 = scmp.eq.s32.totalorder %s22, 0
      %p85 = por %p83, %p84
      %p86 = scmp.ne.s32.totalorder %s72, %s73
      %p87 = scmp.eq.s32.totalorder %s23, 1
      %p88 = por %p86, %p87
      %p90 = scmp.ne.s32.totalorder %s73, %s89
      %p91 = scmp.eq.s32.totalorder %s23, 0
      %p92 = por %p90, %p91
      %s93 = ssub.s32 %s24, %s36
      %p94 = scmp.eq.s32.totalorder %s93, 0
      %s96 = sadd.s32 %s95, 1
      %s97 = scalar_select %p94, %s95, %s96
      %p100 = pneg %p94
      %p101 = scmp.eq.s32.totalorder %s17, 1
      %p102 = por %p100, %p101
      %p103 = scmp.ne.s32.totalorder %s95, %s98
      %p104 = scmp.eq.s32.totalorder %s17, 0
      %p105 = por %p103, %p104
      %p106 = scmp.ne.s32.totalorder %s95, %s98
      %p107 = scmp.eq.s32.totalorder %s22, 1
      %p108 = por %p106, %p107
      %p109 = scmp.ne.s32.totalorder %s98, %s99
      %p110 = scmp.eq.s32.totalorder %s22, 0
      %p111 = por %p109, %p110
      %p112 = scmp.ne.s32.totalorder %s98, %s99
      %p113 = scmp.eq.s32.totalorder %s23, 1
      %p114 = por %p112, %p113
      %p116 = scmp.ne.s32.totalorder %s99, %s115
      %p117 = scmp.eq.s32.totalorder %s23, 0
      %p118 = por %p116, %p117
      %p119 = scmp.le.s32.totalorder 1, %s17
      %p120 = scmp.lt.s32.totalorder %s17, 3
      %p121 = pnand %p119, %p120
      %p122 = pneg %p121
      // Predicated region
      $region9: #{tpu_custom_call.1} parent=5 // pred_check
        _
      $region10: #{tpu_custom_call.1} parent=5 // pred_check_branch
        %124 = sbr.rel (%p121) target = $region12
      $region11: #{tpu_custom_call.1} parent=5 // pred_region
        %s125 = ssub.s32 %s17, 1
      $region12: #{tpu_custom_call.1} parent=5 // pred_fallthru
        _
      %p126 = scmp.lt.s32.totalorder %s17, 2
      // Predicated region
      $region13: #{tpu_custom_call.1} parent=5 // pred_check
        %p127 = pneg %p126
      $region14: #{tpu_custom_call.1} parent=5 // pred_check_branch
        %129 = sbr.rel (%p127) target = $region16
      $region15: #{tpu_custom_call.1} parent=5 // pred_region
        // Predicated region
        $region17: #{tpu_custom_call.1} parent=15 // pred_check
          %p130 = pneg %p51
        $region18: #{tpu_custom_call.1} parent=15 // pred_check_branch
          %132 = sbr.rel (%p130) target = $region20
        $region19: #{tpu_custom_call.1} parent=15 // pred_region
          %s133 = sand.u32 %s41, 1
          %s134 = scalar_lea.sflag [#allocation6], %s133
          %s135 = sand.u32 %s41, 1
          %s136 = smul.addr %s135, 8
          %s137 = scalar_lea.vmem [#allocation5], %s136
          %s138 = smul.u32 2, %s25
          %s140 = ssub.s32 128, 128
          %141 = vsyncadd %s134, %s140
          %s142 = smul.addr %s24, 2
          %s143 = sadd.s32 %s138, %s142
          %s144 = smul.addr %s143, 64
          %s145 = scalar_lea.hbm %s0, %s144
          %s147 = sshll.u32 %s137, 4
          %s148 = int_to_ptr.vmem [resolvable:$true] %s147
          %150 = dma.hbm_to_vmem [thread:$0]  %s145, 128, %s148, %s134
        $region20: #{tpu_custom_call.1} parent=15 // pred_fallthru
          _
        // Predicated region
        $region21: #{tpu_custom_call.1} parent=15 // pred_check
          %p151 = pneg %p79
        $region22: #{tpu_custom_call.1} parent=15 // pred_check_branch
          %153 = sbr.rel (%p151) target = $region24
        $region23: #{tpu_custom_call.1} parent=15 // pred_region
          %s154 = sand.u32 %s69, 1
          %s155 = scalar_lea.sflag [#allocation9], %s154
          %s156 = sand.u32 %s69, 1
          %s157 = smul.addr %s156, 8
          %s158 = scalar_lea.vmem [#allocation8], %s157
          %s159 = smul.u32 2, %s25
          %s161 = ssub.s32 128, 128
          %162 = vsyncadd %s155, %s161
          %s163 = smul.addr %s24, 2
          %s164 = sadd.s32 %s159, %s163
          %s165 = smul.addr %s164, 64
          %s166 = scalar_lea.hbm %s1, %s165
          %s168 = sshll.u32 %s158, 4
          %s169 = int_to_ptr.vmem [resolvable:$true] %s168
          %171 = dma.hbm_to_vmem [thread:$0]  %s166, 128, %s169, %s155
        $region24: #{tpu_custom_call.1} parent=15 // pred_fallthru
          _
      $region16: #{tpu_custom_call.1} parent=5 // pred_fallthru
        _
      %p172 = scmp.le.s32.totalorder 1, %s17
      %p173 = scmp.lt.s32.totalorder %s17, 3
      %p174 = pnand %p172, %p173
      %p175 = pneg %p174
      // Predicated region
      $region25: #{tpu_custom_call.1} parent=5 // pred_check
        _
      $region26: #{tpu_custom_call.1} parent=5 // pred_check_branch
        %177 = sbr.rel (%p174) target = $region28
      $region27: #{tpu_custom_call.1} parent=5 // pred_region
        %s178 = ssub.s32 %s17, 1
        %s179 = sand.u32 %s44, 1
        %s180 = scalar_lea.sflag [#allocation6], %s179
        %s181 = sand.u32 %s44, 1
        %s182 = smul.addr %s181, 8
        %s183 = scalar_lea.vmem [#allocation5], %s182
        // Predicated region
        $region29: #{tpu_custom_call.1} parent=27 // pred_check
          %p184 = pneg %p57
        $region30: #{tpu_custom_call.1} parent=27 // pred_check_branch
          %186 = sbr.rel (%p184) target = $region32
        $region31: #{tpu_custom_call.1} parent=27 // pred_region
          %187 = dma.done %s180, 128
        $region32: #{tpu_custom_call.1} parent=27 // pred_fallthru
          _
        %s188 = sand.u32 %s72, 1
        %s189 = scalar_lea.sflag [#allocation9], %s188
        %s190 = sand.u32 %s72, 1
        %s191 = smul.addr %s190, 8
        %s192 = scalar_lea.vmem [#allocation8], %s191
        // Predicated region
        $region33: #{tpu_custom_call.1} parent=27 // pred_check
          %p193 = pneg %p85
        $region34: #{tpu_custom_call.1} parent=27 // pred_check_branch
          %195 = sbr.rel (%p193) target = $region36
        $region35: #{tpu_custom_call.1} parent=27 // pred_region
          %196 = dma.done %s189, 128
        $region36: #{tpu_custom_call.1} parent=27 // pred_fallthru
          _
        %s197 = sand.u32 %s44, 1
        %s198 = scalar_lea.sflag [#allocation6], %s197
        %s199 = sand.u32 %s44, 1
        %s200 = smul.addr %s199, 8
        %s201 = scalar_lea.vmem [#allocation5], %s200
        %p202 = pneg %p57
        %p203 = pneg %p54
        %s204 = sand.u32 %s72, 1
        %s205 = scalar_lea.sflag [#allocation9], %s204
        %s206 = sand.u32 %s72, 1
        %s207 = smul.addr %s206, 8
        %s208 = scalar_lea.vmem [#allocation8], %s207
        %p209 = pneg %p85
        %p210 = pneg %p82
        %p211 = pneg %p111
        %p212 = pneg %p108
        %s213 = sand.u32 %s98, 1
        %s214 = scalar_lea.sflag [#allocation7], %s213
        %s215 = sand.u32 %s98, 1
        %s216 = smul.addr %s215, 8
        %s217 = scalar_lea.vmem [#allocation10], %s216
        %s218 = smul.u32 2, %s27
        %s219 = smul.u32 2, %s27
        %p220 = scmp.eq.s32.totalorder %s27, 0
        // Predicated region
        $region37: #{tpu_custom_call.1} parent=27 // pred_check
          %p221 = pneg %p220
        $region38: #{tpu_custom_call.1} parent=27 // pred_check_branch
          %223 = sbr.rel (%p221) target = $region40
        $region39: #{tpu_custom_call.1} parent=27 // pred_region
          %224 = vst [vmem:[#allocation2] sm:$0xff] 0.0
          %v225 = vlaneseq
          %vm226 = vcmp.ge.s32.totalorder %v225, 0
          %vm227 = vcmp.lt.s32.totalorder %v225, 256
          %vm228 = vmand %vm226, %vm227
          %229 = vst.msk [vmem:[#allocation3] sm:$0x3] %vm228, 0.0
          %230 = vst.msk [vmem:[#allocation4] sm:$0x3] %vm228, 0.0
        $region40: #{tpu_custom_call.1} parent=27 // pred_fallthru
          _
        %v231 = vld [vmem:[%s183] sm:$0xff]
        %v232 = vld [vmem:[%s192] sm:$0xff]
        %v233 = vmul.f32 %v232, 0.95
        %v234 = vadd.f32 %v233, 0.025
        %v235 = vmax.f32 %v231, 0.0
        %v236 = vmul.f32 %v231, %v234
        %v237 = vsub.f32 %v235, %v236
        %v238 = vand.u32 2147483647, %v231
        %v239 = vsub.f32 0.0, %v238
        %v240 = vmul.f32 %v239, 1.442695
        %v241 = vpow.pop %v240
        %v242 = vadd.f32 %v241, 1.0
        %v243 = vlog2.pop %v242
        %v244 = vmul.f32 %v243, 0.6931472
        %v245 = vmul.f32 -0.5, %v241
        %v246 = vadd.f32 %v245, 1.0
        %v247 = vmul.f32 %v246, %v241
        %v248 = vand.u32 2147483647, %v241
        %vm249 = vcmp.lt.f32.partialorder %v248, 0.0004427343
        %v250 = vsel %vm249, %v247, %v244
        %v251 = vadd.f32 %v237, %v250
        %v252 = vld [vmem:[#allocation2] sm:$0xff]
        %v253 = vadd.f32 %v252, %v251
        %254 = vst [vmem:[#allocation2] sm:$0xff] %v253
        %v255 = vld [vmem:[#allocation3] sm:$0x3]
        %v258 = vunpack.c.l.s4 1966171168
        %v259 = vunpack.c.0.s8 %v258
        %v260 = vlaneseq
        %v261 = vshrl.u32 %v260, 7
        %v262 = vsub.s32 %v259, %v261
        %v263 = vrot.slane %v236, %v262
        %v265 = vunpack.c.l.s4 1966171168
        %v266 = vunpack.c.0.s8 %v265
        %v267 = vlaneseq
        %v268 = vshrl.u32 %v267, 7
        %v269 = vsub.s32 %v266, %v268
        %v270 = vrot.slane %v263, %v269
        %v272 = vadd.f32 %v255, %v270
        %v273 = vlaneseq
        %vm274 = vcmp.ge.s32.totalorder %v273, 0
        %vm275 = vcmp.lt.s32.totalorder %v273, 256
        %vm276 = vmand %vm274, %vm275
        %277 = vst.msk [vmem:[#allocation3] sm:$0x3] %vm276, %v272
        %v278 = vld [vmem:[#allocation4] sm:$0x3]
        %v279 = vadd.f32 %v231, %v234
        %v282 = vunpack.c.l.s4 1966171168
        %v283 = vunpack.c.0.s8 %v282
        %v284 = vlaneseq
        %v285 = vshrl.u32 %v284, 7
        %v286 = vsub.s32 %v283, %v285
        %v287 = vrot.slane %v279, %v286
        %v289 = vunpack.c.l.s4 1966171168
        %v290 = vunpack.c.0.s8 %v289
        %v291 = vlaneseq
        %v292 = vshrl.u32 %v291, 7
        %v293 = vsub.s32 %v290, %v292
        %v294 = vrot.slane %v287, %v293
        %v296 = vadd.f32 %v278, %v294
        %297 = vst.msk [vmem:[#allocation4] sm:$0x3] %vm276, %v296
        // Predicated region
        $region41: #{tpu_custom_call.1} parent=27 // pred_check
          %p298 = pneg %p220
        $region42: #{tpu_custom_call.1} parent=27 // pred_check_branch
          %300 = sbr.rel (%p298) target = $region44
        $region43: #{tpu_custom_call.1} parent=27 // pred_region
          %v301 = vld [vmem:[#allocation2] sm:$0xff]
          %v303 = vcombine.high %v301, %v301
          %vm305 = vcmask 1043456
          %v306 = vsel %vm305, %v301, 0.0
          %v307 = vsel %vm305, %v303, 0.0
          %v308 = vadd.f32 %v306, %v307
          %309 = vadd.xlane.f32.xlu0 %v308
          %v310 = vpop.xlane.xlu0 %309
          %v311 = vrot.slane %v310, 4
          %v312 = vadd.f32 %v310, %v311
          %v313 = vrot.slane %v312, 2
          %v314 = vadd.f32 %v312, %v313
          %v315 = vrot.slane %v314, 1
          %v316 = vadd.f32 %v314, %v315
          %s317 = vtos %v316
          %v318 = vld [vmem:[#allocation3] sm:$0x3]
          %v320 = vlaneseq
          %v321 = vshrl.u32 %v320, 7
          %v322 = vsub.s32 0, %v321
          %v323 = vrot.slane %v318, %v322
          %v324 = vlaneseq
          %v325 = vshrl.u32 %v324, 7
          %v326 = vsub.s32 1, %v325
          %v327 = vrot.slane %v318, %v326
          %vm330 = vcmask 1040384
          %v331 = vsel %vm330, %v323, 0.0
          %v332 = vsel %vm330, %v327, 0.0
          %v333 = vadd.f32 %v331, %v332
          %334 = vadd.xlane.f32.xlu0 %v333
          %v335 = vpop.xlane.xlu0 %334
          %v336 = vrot.slane %v335, 4
          %v337 = vadd.f32 %v335, %v336
          %v338 = vrot.slane %v337, 2
          %v339 = vadd.f32 %v337, %v338
          %v340 = vrot.slane %v339, 1
          %v341 = vadd.f32 %v339, %v340
          %s342 = vtos %v341
          %v343 = vld [vmem:[#allocation4] sm:$0x3]
          %v345 = vlaneseq
          %v346 = vshrl.u32 %v345, 7
          %v347 = vsub.s32 0, %v346
          %v348 = vrot.slane %v343, %v347
          %v349 = vlaneseq
          %v350 = vshrl.u32 %v349, 7
          %v351 = vsub.s32 1, %v350
          %v352 = vrot.slane %v343, %v351
          %v355 = vsel %vm330, %v348, 0.0
          %v356 = vsel %vm330, %v352, 0.0
          %v357 = vadd.f32 %v355, %v356
          %358 = vadd.xlane.f32.xlu0 %v357
          %v359 = vpop.xlane.xlu0 %358
          %v360 = vrot.slane %v359, 4
          %v361 = vadd.f32 %v359, %v360
          %v362 = vrot.slane %v361, 2
          %v363 = vadd.f32 %v361, %v362
          %v364 = vrot.slane %v363, 1
          %v365 = vadd.f32 %v363, %v364
          %s366 = vtos %v365
          %v367 = vlaneseq
          %v368 = vshrl.u32 %v367, 7
          %vm369 = vcmp.eq.s32.totalorder %v368, 0
          %vm370 = vcmp.eq.s32.totalorder %v368, 1
          %vm371 = vcmp.eq.s32.totalorder %v368, 2
          %v372 = vstv %s366
          %v373 = vsel %vm371, %v372, 0.0
          %v374 = vstv %s342
          %v375 = vsel %vm370, %v374, %v373
          %v376 = vstv %s317
          %v377 = vsel %vm369, %v376, %v375
          %378 = vst [vmem:[%s217] sm:$0xff] %v377
        $region44: #{tpu_custom_call.1} parent=27 // pred_fallthru
          _
        %s379 = sand.u32 %s98, 1
        %s380 = scalar_lea.sflag [#allocation7], %s379
        %s381 = sand.u32 %s98, 1
        %s382 = smul.addr %s381, 8
        %s383 = scalar_lea.vmem [#allocation10], %s382
        // Predicated region
        $region45: #{tpu_custom_call.1} parent=27 // pred_check
          %p384 = pneg %p108
        $region46: #{tpu_custom_call.1} parent=27 // pred_check_branch
          %386 = sbr.rel (%p384) target = $region48
        $region47: #{tpu_custom_call.1} parent=27 // pred_region
          %s388 = ssub.s32 128, 128
          %389 = vsyncadd %s380, %s388
          %s390 = smul.addr %s26, 128
          %s391 = scalar_lea.hbm %s2, %s390
          %s393 = sshll.u32 %s383, 4
          %s394 = int_to_ptr.vmem [resolvable:$true] %s393
          %396 = dma.vmem_to_hbm [thread:$0]  %s394, 128, %s391, %s380
        $region48: #{tpu_custom_call.1} parent=27 // pred_fallthru
          _
      $region28: #{tpu_custom_call.1} parent=5 // pred_fallthru
        _
      %p397 = scmp.le.s32.totalorder 2, %s17
      // Predicated region
      $region49: #{tpu_custom_call.1} parent=5 // pred_check
        %p398 = pneg %p397
      $region50: #{tpu_custom_call.1} parent=5 // pred_check_branch
        %400 = sbr.rel (%p398) target = $region52
      $region51: #{tpu_custom_call.1} parent=5 // pred_region
        %s401 = ssub.s32 %s17, 2
        // Predicated region
        $region53: #{tpu_custom_call.1} parent=51 // pred_check
          %p402 = pneg %p114
        $region54: #{tpu_custom_call.1} parent=51 // pred_check_branch
          %404 = sbr.rel (%p402) target = $region56
        $region55: #{tpu_custom_call.1} parent=51 // pred_region
          %s405 = sand.u32 %s99, 1
          %s406 = scalar_lea.sflag [#allocation7], %s405
          %s407 = sand.u32 %s99, 1
          %s408 = smul.addr %s407, 8
          %s409 = scalar_lea.vmem [#allocation10], %s408
          %410 = dma.done %s406, 128
        $region56: #{tpu_custom_call.1} parent=51 // pred_fallthru
          _
      $region52: #{tpu_custom_call.1} parent=5 // pred_fallthru
        _
    $region6: #{tpu_custom_call.1} parent=1 // loop_footer
      %s21 = sadd.s32 1, %s17
    $region7: #{tpu_custom_call.1} parent=1 // loop_footer_branch
      %16 = sbr.rel target = $region3
    $region8: #{tpu_custom_call.1} parent=1 // loop_exit
      _
    %411 = vsyncpa [#allocation6], 1
    %s412 = scalar_lea.sflag [#allocation6], 1
    %413 = vsyncpa %s412, 1
    %414 = vsyncpa [#allocation9], 1
    %s415 = scalar_lea.sflag [#allocation9], 1
    %416 = vsyncpa %s415, 1
    %417 = vsyncpa [#allocation7], 1
    %s418 = scalar_lea.sflag [#allocation7], 1
    %419 = vsyncpa %s418, 1

</llo_original>
